<compile_context>
chip_gen: v6e
topology: v6e:2x2x1
jax: 0.10.0
libtpu: 0.0.40
codegen_flags: <defaults>
</compile_context>

<pallas_src>
import math

import jax
import jax.numpy as jnp
from jax.experimental import pallas as pl
from jax.experimental.pallas import tpu as pltpu


def _choose_tile(full: int, preferred: int, align: int) -> int:
    """Largest divisor of `full` that is a multiple of `align` and <= preferred.

    Falls back to the full extent (always a legal block along that axis).
    """
    if full <= preferred:
        return full
    t = (preferred // align) * align
    while t >= align:
        if full % t == 0:
            return t
        t -= align
    return full


def _token_conv_matmul_kernel(x_ref, w_ref, o_ref):
    # x_ref: (tile_m, 3*c_in)  im2col rows (tap-major, channel-minor)
    # w_ref: (3*c_in, tile_d)  flattened conv weight, W_flat[k*C + c, o] = W[o, c, k]
    # o_ref: (tile_m, tile_d)
    o_ref[...] = jnp.dot(
        x_ref[...], w_ref[...], preferred_element_type=jnp.float32
    ).astype(o_ref.dtype)


def token_embedding(x: jax.Array, weight: jax.Array) -> jax.Array:
    """Equivalent of TokenEmbedding(c_in, d_model).forward(x).

    x:      (B, L, c_in)  float input (the PyTorch module permutes internally).
    weight: (d_model, c_in, 3)  Conv1d weight in PyTorch (O, I, W) layout.
    Returns (B, L, d_model), same dtype as x.
    """
    B, L, C = x.shape
    d_model = weight.shape[0]
    assert weight.shape == (d_model, C, 3), weight.shape

    # Circular padding (padding=1, kernel_size=3, padding_mode='circular')
    # followed by im2col over the 3 taps.  Both are cheap layout ops on the
    # narrow (c_in-wide) input; the heavy work (the matmul producing d_model
    # wide rows) stays in the Pallas kernel.
    x_pad = jnp.concatenate([x[:, -1:, :], x, x[:, :1, :]], axis=1)      # (B, L+2, C)
    x_unf = jnp.concatenate(
        [x_pad[:, 0:L, :], x_pad[:, 1:L + 1, :], x_pad[:, 2:L + 2, :]], axis=-1
    )                                                                    # (B, L, 3C)

    M = B * L
    K = 3 * C
    x_unf = x_unf.reshape(M, K)
    # W_flat[k*C + c, o] = W[o, c, k]  so that  x_unf @ W_flat == conv output.
    w_flat = jnp.transpose(weight, (2, 1, 0)).reshape(K, d_model).astype(x.dtype)

    # Large, legal tiles: rows multiple of 8 (or full), cols multiple of 128
    # (or full).  Output block <= 1024 * 512 * 4B = 2 MiB.
    tile_m = _choose_tile(M, 1024, 8)
    tile_d = _choose_tile(d_model, 512, 128)
    grid = (M // tile_m, d_model // tile_d)

    out = pl.pallas_call(
        _token_conv_matmul_kernel,
        out_shape=jax.ShapeDtypeStruct((M, d_model), x.dtype),
        grid_spec=pltpu.PrefetchScalarGridSpec(
            num_scalar_prefetch=0,
            grid=grid,
            in_specs=[
                # im2col rows for this row tile (K is tiny: 3 * c_in).
                pl.BlockSpec((tile_m, K), lambda i, j: (i, 0)),
                # flattened weights for this d_model tile.
                pl.BlockSpec((K, tile_d), lambda i, j: (0, j)),
            ],
            out_specs=pl.BlockSpec((tile_m, tile_d), lambda i, j: (i, j)),
        ),
        compiler_params=pltpu.CompilerParams(
            dimension_semantics=("parallel", "parallel")
        ),
    )(x_unf, w_flat)

    return out.reshape(B, L, d_model)


def token_embedding_ref(x: jax.Array, weight: jax.Array) -> jax.Array:
    """Pure-JAX reference via XLA conv (independent code path)."""
    x_pad = jnp.concatenate([x[:, -1:, :], x, x[:, :1, :]], axis=1)
    return jax.lax.conv_general_dilated(
        x_pad,
        weight,
        window_strides=(1,),
        padding="VALID",
        dimension_numbers=("NWC", "OIW", "NWC"),
    )


if __name__ == "__main__":
    key = jax.random.PRNGKey(0)
    k_x, k_w = jax.random.split(key)

    batch, seq_len, c_in, d_model = 2, 16, 4, 32
    x = jax.random.normal(k_x, (batch, seq_len, c_in), dtype=jnp.float32)

    # Mirror nn.init.kaiming_normal_(mode='fan_in', nonlinearity='leaky_relu')
    # for the Conv1d weight of shape (d_model, c_in, 3).
    fan_in = c_in * 3
    gain = math.sqrt(2.0 / (1.0 + 0.01 ** 2))
    std = gain / math.sqrt(fan_in)
    weight = std * jax.random.normal(k_w, (d_model, c_in, 3), dtype=jnp.float32)

    out = token_embedding(x, weight)
    out = jax.block_until_ready(out)

    ref = token_embedding_ref(x, weight)
    assert out.shape == (batch, seq_len, d_model), out.shape
    assert out.dtype == jnp.float32
    assert jnp.allclose(out, ref, atol=1e-4, rtol=1e-4), float(
        jnp.max(jnp.abs(out - ref))
    )

    print("KERNEL_OK")
</pallas_src>

<mosaic_0001>
module attributes {stable_mosaic.version = 11 : i64} {
  func.func @_token_conv_matmul_kernel(%arg0: i32, %arg1: i32, %arg2: memref<32x12xf32, #tpu.memory_space<vmem>>, %arg3: memref<12x32xf32, #tpu.memory_space<vmem>>, %arg4: memref<32x32xf32, #tpu.memory_space<vmem>>) attributes {dimension_semantics = [#tpu.dimension_semantics<parallel>, #tpu.dimension_semantics<parallel>], iteration_bounds = array<i64: 1, 1>, scalar_prefetch = 0 : i64, scratch_operands = 0 : i64, tpu.core_type = #tpu.core_type<tc>, window_params = [{transform_indices = @transform_0, window_bounds = array<i64: 32, 12>}, {transform_indices = @transform_1, window_bounds = array<i64: 12, 32>}, {transform_indices = @transform_2, window_bounds = array<i64: 32, 32>}]} {
    %c0 = arith.constant 0 : index
    %c0_0 = arith.constant 0 : index
    %0 = vector.load %arg2[%c0, %c0_0] : memref<32x12xf32, #tpu.memory_space<vmem>>, vector<32x12xf32>
    %c0_1 = arith.constant 0 : index
    %c0_2 = arith.constant 0 : index
    %1 = vector.load %arg3[%c0_1, %c0_2] : memref<12x32xf32, #tpu.memory_space<vmem>>, vector<12x32xf32>
    %cst = arith.constant dense<0.000000e+00> : vector<32x32xf32>
    %2 = tpu.matmul %0, %1, %cst {dimension_numbers = #tpu.dot_dimension_numbers<[1], [0], [0], [1], [0, 0, 1, 1], [], []>} : vector<32x12xf32>, vector<12x32xf32>, vector<32x32xf32> -> vector<32x32xf32>
    %c0_3 = arith.constant 0 : index
    %c0_4 = arith.constant 0 : index
    %3 = vector.load %arg4[%c0_3, %c0_4] : memref<32x32xf32, #tpu.memory_space<vmem>>, vector<32x32xf32>
    tpu.vector_store %arg4[%c0_3, %c0_4], %2 {strides = array<i32>} : memref<32x32xf32, #tpu.memory_space<vmem>>, vector<32x32xf32>,
    return
  }
  func.func @transform_0(%arg0: i32, %arg1: i32) -> (i32, i32) {
    %c0_i32 = arith.constant 0 : i32
    %c0_i32_0 = arith.constant 0 : i32
    return %arg0, %c0_i32 : i32, i32
  }
  func.func @transform_1(%arg0: i32, %arg1: i32) -> (i32, i32) {
    %c0_i32 = arith.constant 0 : i32
    %c0_i32_0 = arith.constant 0 : i32
    return %c0_i32, %arg1 : i32, i32
  }
  func.func @transform_2(%arg0: i32, %arg1: i32) -> (i32, i32) {
    %c0_i32 = arith.constant 0 : i32
    return %arg0, %arg1 : i32, i32
  }
}

</mosaic_0001>

<llo_original>
// kernel: tpu_custom_call.1
$region0: #{tpu_custom_call.1}
  #allocation0 [shape = 'u32[]', space=smem, size = 0x4, offset = 0x4, fixed_abs, tag = 'smem constant byte address 0x4 - core index']
  #allocation1 [shape = 'u32[144,128]{1,0:T(1,128)}', space=vmem, size = 0x12000, scoped, tag = 'internal scratch']
  %s0 = inlined_call_operand.vmem [shape: f32[32,12], index: 0, kind: input, shape index: {}]
  %s1 = inlined_call_operand.vmem [shape: f32[12,32], index: 1, kind: input, shape index: {}]
  %s2 = inlined_call_operand.hbm [shape: f32[32,32], index: 2, kind: output, shape index: {}]
  %s3 = sld [smem:[#allocation0]]
  $region18: #{tpu_custom_call.1} parent=0
    _
  %s5 = ssub.s32 1, %s3
  %s6 = scalar_select 0, %s5, %s3
  $region1: #{tpu_custom_call.1} parent=0
    #allocation2 [shape = 'u8[16384]{0}', space=vmem, size = 0x4000, scoped, tag = 'output window, operand 0, single buffered']
    #allocation3 [shape = 's32[1]{0}', space=sflag, size = 0x4, scoped, tag = 'scoped memory for tpu_custom_call.1']
    %7 = vsyncpa [#allocation3], 0
    // Predicated region
    $region2: #{tpu_custom_call.1} parent=1 // pred_check
      _
    $region3: #{tpu_custom_call.1} parent=1 // pred_check_branch
      %9 = sbr.rel (0) target = $region5
    $region4: #{tpu_custom_call.1} parent=1 // pred_region
      _
    $region5: #{tpu_custom_call.1} parent=1 // pred_fallthru
      _
    // Predicated region
    $region6: #{tpu_custom_call.1} parent=1 // pred_check
      _
    $region7: #{tpu_custom_call.1} parent=1 // pred_check_branch
      %11 = sbr.rel (0) target = $region9
    $region8: #{tpu_custom_call.1} parent=1 // pred_region
      _
    $region9: #{tpu_custom_call.1} parent=1 // pred_fallthru
      _
    %v12 = vld [vmem:[%s0] sm:$0xff]
    %v13 = vld [vmem:[%s0 + $0x8] sm:$0xff]
    %v14 = vld [vmem:[%s0 + $0x10] sm:$0xff]
    %v15 = vld [vmem:[%s0 + $0x18] sm:$0xff]
    %v16 = vld [vmem:[%s1] sm:$0xff]
    %v17 = vld [vmem:[%s1 + $0x8] sm:$0xf]
    %vm18 = vcmask 97280
    %v20 = vsel %vm18, %v12, 0
    %v23 = vsel %vm18, %v13, 0
    %v26 = vsel %vm18, %v14, 0
    %v29 = vsel %vm18, %v15, 0
    %vm31 = vcmask 1043456
    %v33 = vsel %vm31, %v17, 0
    %35 = vmatprep.subr.mxu0 0.0
    %36 = vmatpush1.msra.mxu0 0.0
    %37 = vmatprep.subr.mxu0 0.0
    %38 = vmatpush1.msra.mxu0 0.0
    %39 = vmatprep.subr.mxu0 0.0
    %40 = vmatpush1.msra.mxu0 0.0
    %41 = vmatprep.subr.mxu0 0.0
    %42 = vmatpush1.msra.mxu0 0.0
    %43 = vmatprep.subr.mxu0 0.0
    %44 = vmatpush1.msra.mxu0 0.0
    %45 = vmatprep.subr.mxu0 0.0
    %46 = vmatpush1.msra.mxu0 0.0
    %47 = vmatprep.subr.mxu0 0.0
    %48 = vmatpush1.msra.mxu0 0.0
    %49 = vmatprep.subr.mxu0 0.0
    %50 = vmatpush1.msra.mxu0 0.0
    %51 = vmatprep.subr.mxu0 0.0
    %52 = vmatpush1.msra.mxu0 0.0
    %53 = vmatprep.subr.mxu0 0.0
    %54 = vmatpush1.msra.mxu0 0.0
    %55 = vmatprep.subr.mxu0 0.0
    %56 = vmatpush1.msra.mxu0 0.0
    %57 = vmatprep.subr.mxu0 0.0
    %58 = vmatpush1.msra.mxu0 0.0
    %59 = vmatprep.subr.mxu0 0.0
    %60 = vmatpush1.msra.mxu0 0.0
    %61 = vmatprep.subr.mxu0 0.0
    %62 = vmatpush1.msra.mxu0 0.0
    %63 = vmatprep.subr.mxu0 0.0
    %64 = vmatpush1.msra.mxu0 %v33
    %65 = vmatprep.subr.mxu0 0.0
    %66 = vmatpush1.msra.mxu0 %v16
    %67 = vmatprep.subr.mxu0 0.0
    %68 = vmatpush2.msra.mxu0 0.0
    %69 = vmatprep.subr.mxu0 0.0
    %70 = vmatpush2.msra.mxu0 0.0
    %71 = vmatprep.subr.mxu0 0.0
    %72 = vmatpush2.msra.mxu0 0.0
    %73 = vmatprep.subr.mxu0 0.0
    %74 = vmatpush2.msra.mxu0 0.0
    %75 = vmatprep.subr.mxu0 0.0
    %76 = vmatpush2.msra.mxu0 0.0
    %77 = vmatprep.subr.mxu0 0.0
    %78 = vmatpush2.msra.mxu0 0.0
    %79 = vmatprep.subr.mxu0 0.0
    %80 = vmatpush2.msra.mxu0 0.0
    %81 = vmatprep.subr.mxu0 0.0
    %82 = vmatpush2.msra.mxu0 0.0
    %83 = vmatprep.subr.mxu0 0.0
    %84 = vmatpush2.msra.mxu0 0.0
    %85 = vmatprep.subr.mxu0 0.0
    %86 = vmatpush2.msra.mxu0 0.0
    %87 = vmatprep.subr.mxu0 0.0
    %88 = vmatpush2.msra.mxu0 0.0
    %89 = vmatprep.subr.mxu0 0.0
    %90 = vmatpush2.msra.mxu0 0.0
    %91 = vmatprep.subr.mxu0 0.0
    %92 = vmatpush2.msra.mxu0 0.0
    %93 = vmatprep.subr.mxu0 0.0
    %94 = vmatpush2.msra.mxu0 0.0
    %95 = vmatprep.subr.mxu0 0.0
    %96 = vmatpush2.msra.mxu0 0.0
    %97 = vmatprep.subr.mxu0 0.0
    %98 = vmatpush2.msra.mxu0 0.0
    %99 = vmatprep.mubr.f32.mxu0 0.0
    %100 = vmatmul.mubr.f32.gmra.mxu0 %v20
    %v101 = vpop.f32.mrf.mxu0
    %v102 = vadd.f32 0.0, %v101
    %v103 = vpop.f32.mrf.mxu0
    %104 = vmatprep.mubr.f32.mxu0 0.0
    %105 = vmatmul.mubr.f32.gmra.mxu0 %v23
    %v106 = vpop.f32.mrf.mxu0
    %v107 = vadd.f32 0.0, %v106
    %v108 = vpop.f32.mrf.mxu0
    %109 = vmatprep.mubr.f32.mxu0 0.0
    %110 = vmatmul.mubr.f32.gmra.mxu0 %v26
    %v111 = vpop.f32.mrf.mxu0
    %v112 = vadd.f32 0.0, %v111
    %v113 = vpop.f32.mrf.mxu0
    %114 = vmatprep.mubr.f32.mxu0 0.0
    %115 = vmatmul.mubr.f32.gmra.mxu0 %v29
    %v116 = vpop.f32.mrf.mxu0
    %v117 = vadd.f32 0.0, %v116
    %v118 = vpop.f32.mrf.mxu0
    %119 = vdwg.mxu0
    %vm120 = vcmask 261120
    %121 = vst.msk [vmem:[#allocation2] sm:$0xff] %vm120, %v102
    %122 = vst.msk [vmem:[#allocation2 + $0x8] sm:$0xff] %vm120, %v107
    %123 = vst.msk [vmem:[#allocation2 + $0x10] sm:$0xff] %vm120, %v112
    %124 = vst.msk [vmem:[#allocation2 + $0x18] sm:$0xff] %vm120, %v117
    // Predicated region
    $region10: #{tpu_custom_call.1} parent=1 // pred_check
      _
    $region11: #{tpu_custom_call.1} parent=1 // pred_check_branch
      %126 = sbr.rel (0) target = $region13
    $region12: #{tpu_custom_call.1} parent=1 // pred_region
      %s128 = ssub.s32 512, 512
      %129 = vsyncadd [#allocation3], %s128
      %s130 = sshll.u32 [#allocation2], 4
      %s131 = int_to_ptr.vmem [resolvable:$true] %s130
      %136 = dma.vmem_to_hbm [thread:$0]  %s131, 512, %s2, [#allocation3], 128, 128, 8
    $region13: #{tpu_custom_call.1} parent=1 // pred_fallthru
      _
    // Predicated region
    $region14: #{tpu_custom_call.1} parent=1 // pred_check
      _
    $region15: #{tpu_custom_call.1} parent=1 // pred_check_branch
      %138 = sbr.rel (0) target = $region17
    $region16: #{tpu_custom_call.1} parent=1 // pred_region
      %139 = dma.done [#allocation3], 512
    $region17: #{tpu_custom_call.1} parent=1 // pred_fallthru
      _
    %140 = vsyncpa [#allocation3], 1

</llo_original>
